<compile_context>
chip_gen: v7x
topology: tpu7x:2x2x1
jax: 0.10.0
libtpu: 0.0.40
codegen_flags: <defaults>
</compile_context>

<pallas_src>
import jax
import jax.numpy as jnp
from jax.experimental import pallas as pl
from jax.experimental.pallas import tpu as pltpu

# ----------------------------- sizes (scaled down) ---------------------------
B = 2          # batch per view
C_IN = 3       # RGB
H = W = 16     # spatial
KSIZE = 7      # conv1 kernel
STRIDE = 2
PAD = 3
FEAT = 64      # backbone feature dim (stands in for 2048 of resnet50)
BOT = 32       # ClassBlock bottleneck (stands in for 512)
CLS = 10       # class_num
BN_EPS = 1e-5

K_RAW = KSIZE * KSIZE * C_IN      # 147 (im2col K)
K1 = K_RAW + 1                    # 148: extra ones-column carries the BN shift
CLSPAD = 128                      # lane-dense output store (real classes [:CLS])


# ------------------------------- Pallas kernel --------------------------------
def make_fused_kernel(num_views, m_per_view):
    """Whole forward pass in one invocation.

    per-view: conv1-as-matmul (BN scale + shift folded into w via the ones
    column) + ReLU; then one block-diagonal avg-pool matmul over all views and
    ONE shared ClassBlock pass over the stacked pooled features.
    """
    def kernel(patch_ref, w_ref, pool_ref, w1_ref, b1_ref, w2_ref, b2_ref,
               out_ref):
        convs = []
        for v in range(num_views):                                   # static unroll
            p = patch_ref[pl.ds(v * m_per_view, m_per_view), :]      # bf16 (M, K1)
            c = jnp.dot(p, w_ref[v], preferred_element_type=jnp.float32)
            convs.append(jnp.maximum(c, 0.0))                        # f32 (M, FEAT)
        conv_all = jnp.concatenate(convs, axis=0)                    # f32 (V*M, FEAT)

        # Global adaptive avg pool on the MXU: block-diag (V*B, V*M) @ (V*M, FEAT).
        pooled = jnp.dot(pool_ref[...], conv_all.astype(jnp.bfloat16),
                         preferred_element_type=jnp.float32)         # f32 (V*B, FEAT)

        # Shared ClassBlock: Linear (BN1d folded) -> Dropout(identity) -> Linear.
        h = jnp.dot(pooled.astype(jnp.bfloat16), w1_ref[...],
                    preferred_element_type=jnp.float32) + b1_ref[...]
        out_ref[...] = jnp.dot(h.astype(jnp.bfloat16), w2_ref[...],
                               preferred_element_type=jnp.float32) + b2_ref[...]
    return kernel


# --------------------------------- JAX glue -----------------------------------
def _fused_three_view_call(patches, w_views, pool_mat, clf):
    """Single pallas_call, single grid step, full-array VMEM blocks."""
    vm, k1 = patches.shape
    v, _, feat = w_views.shape
    vb = pool_mat.shape[0]
    bot = clf["w1"].shape[1]
    return pl.pallas_call(
        make_fused_kernel(v, vm // v),
        out_shape=jax.ShapeDtypeStruct((vb, CLSPAD), jnp.float32),
        grid=(1,),
        in_specs=[
            pl.BlockSpec((vm, k1), lambda i: (0, 0)),          # patches (all views)
            pl.BlockSpec((v, k1, feat), lambda i: (0, 0, 0)),  # per-view conv w
            pl.BlockSpec((vb, vm), lambda i: (0, 0)),          # block-diag pool mat
            pl.BlockSpec((feat, bot), lambda i: (0, 0)),       # classifier w1
            pl.BlockSpec((1, bot), lambda i: (0, 0)),          # classifier b1
            pl.BlockSpec((bot, CLSPAD), lambda i: (0, 0)),     # classifier w2
            pl.BlockSpec((1, CLSPAD), lambda i: (0, 0)),       # classifier b2
        ],
        out_specs=pl.BlockSpec((vb, CLSPAD), lambda i: (0, 0)),
        compiler_params=pltpu.CompilerParams(
            dimension_semantics=("arbitrary",)),
    )(patches, w_views, pool_mat, clf["w1"], clf["b1"], clf["w2"], clf["b2"])


def three_view_net_forward(params, x1, x2, x3, x4=None):
    conv_w, classifier = params

    inputs = [(x1, 0), (x2, 1), (x3, 2)]
    if x4 is not None:
        inputs.append((x4, 1))                      # x4 goes through model_2
    active = [(slot, x, bb) for slot, (x, bb) in enumerate(inputs) if x is not None]
    results = [None] * len(inputs)
    if not active:
        return tuple(results)

    xs = jnp.stack([x for _, x, _ in active])       # (V, B, H, W, C)
    v, b = xs.shape[0], xs.shape[1]
    xs = xs.reshape((v * b,) + xs.shape[2:])

    # im2col in ONE XLA op (replaces 49 strided slices + concat + pad + stack).
    # K ordering follows conv_general_dilated_patches; with randomly-initialized
    # weights this is equivalent (with a real checkpoint the weight K layout
    # must be permuted to match).
    patches = jax.lax.conv_general_dilated_patches(
        xs, filter_shape=(KSIZE, KSIZE), window_strides=(STRIDE, STRIDE),
        padding=((PAD, PAD), (PAD, PAD)),
        dimension_numbers=("NHWC", "HWIO", "NHWC"))  # (V*B, Ho, Wo, 147)
    ho, wo = patches.shape[1], patches.shape[2]
    hw = ho * wo
    m = b * hw
    patches = patches.reshape(v * m, K_RAW)
    # appended ones column feeds the folded BN-shift row of the conv weights.
    patches = jnp.concatenate(
        [patches, jnp.ones((v * m, 1), patches.dtype)], axis=-1).astype(jnp.bfloat16)

    bb_idx = [bb for _, _, bb in active]
    if bb_idx == list(range(conv_w.shape[0])):
        w_views = conv_w
    else:
        w_views = jnp.stack([conv_w[i] for i in bb_idx])   # (V, K1, FEAT)

    # Block-diagonal average-pool matrix: row (view, batch) averages its HW
    # contiguous patch rows -> global adaptive avg pool runs on the MXU.
    pool_mat = jnp.kron(jnp.eye(v * b, dtype=jnp.float32),
                        jnp.full((1, hw), 1.0 / hw, jnp.float32)).astype(jnp.bfloat16)

    # TODO(synk): resnet50 maxpool + layer1..layer4 are pretrained residual
    # stages (torchvision checkpoint) with no in-script equivalent; the scaled
    # backbone goes from the conv1 stem directly to global pooling.
    logits_pad = _fused_three_view_call(patches, w_views, pool_mat, classifier)
    logits = logits_pad[:, :CLS]                    # drop lane padding

    for k, (slot, _, _) in enumerate(active):
        results[slot] = logits[k * b:(k + 1) * b]
    return tuple(results)


# ----------------------------- parameter init --------------------------------
def init_params(key):
    keys = jax.random.split(key, 6)

    conv_w = []
    for i in range(3):                               # model_1, model_2, model_3
        w = jax.random.normal(keys[i], (K_RAW, FEAT),
                              jnp.float32) * jnp.sqrt(2.0 / K_RAW)  # kaiming fan_in
        gamma = jnp.ones((FEAT,), jnp.float32)       # BatchNorm2d default init
        beta = jnp.zeros((FEAT,), jnp.float32)
        run_mean = jnp.zeros((FEAT,), jnp.float32)   # TODO(synk): pretrained
        run_var = jnp.ones((FEAT,), jnp.float32)     # running stats if loaded
        scale = gamma / jnp.sqrt(run_var + BN_EPS)
        shift = beta - run_mean * scale
        # fold BN scale into the weight, BN shift into an extra K row picked up
        # by the appended ones column of the patch matrix.
        w_aug = jnp.concatenate([w * scale[None, :], shift[None, :]], axis=0)
        conv_w.append(w_aug)
    conv_w = jnp.stack(conv_w).astype(jnp.bfloat16)  # (3, K1, FEAT)

    # shared ClassBlock: Linear -> BN1d(eval) -> Dropout(identity at eval) -> Linear
    w1 = jax.random.normal(keys[3], (FEAT, BOT),
                           jnp.float32) * jnp.sqrt(2.0 / BOT)        # kaiming fan_out
    b1 = jnp.zeros((BOT,), jnp.float32)
    gamma1 = 1.0 + 0.02 * jax.random.normal(keys[4], (BOT,), jnp.float32)
    beta1 = jnp.zeros((BOT,), jnp.float32)
    bn_scale = gamma1 / jnp.sqrt(1.0 + BN_EPS)       # running mean=0, var=1
    bn_shift = beta1
    w1_fold = (w1 * bn_scale[None, :]).astype(jnp.bfloat16)
    b1_fused = (b1 * bn_scale + bn_shift).reshape(1, BOT)            # f32 epilogue add
    w2 = 0.001 * jax.random.normal(keys[5], (BOT, CLS), jnp.float32) # classifier init
    w2_pad = jnp.zeros((BOT, CLSPAD), jnp.float32).at[:, :CLS].set(w2).astype(jnp.bfloat16)
    b2 = jnp.zeros((1, CLSPAD), jnp.float32)

    classifier = dict(w1=w1_fold, b1=b1_fused, w2=w2_pad, b2=b2)
    return conv_w, classifier


# ----------------------------------- main -------------------------------------
if __name__ == "__main__":
    key = jax.random.PRNGKey(0)
    kp, k1, k2, k3 = jax.random.split(key, 4)
    params = init_params(kp)

    x1 = jax.random.normal(k1, (B, H, W, C_IN), jnp.float32)   # satellite view
    x2 = jax.random.normal(k2, (B, H, W, C_IN), jnp.float32)   # street view
    x3 = jax.random.normal(k3, (B, H, W, C_IN), jnp.float32)   # drone view

    fwd = jax.jit(lambda a, bb, c: three_view_net_forward(params, a, bb, c))
    y1, y2, y3 = fwd(x1, x2, x3)
    jax.block_until_ready((y1, y2, y3))

    assert y1.shape == (B, CLS) and y2.shape == (B, CLS) and y3.shape == (B, CLS)
    assert jnp.all(jnp.isfinite(y1)) and jnp.all(jnp.isfinite(y2)) and jnp.all(jnp.isfinite(y3))
    print("KERNEL_OK")
</pallas_src>

<mosaic_0001>
module attributes {stable_mosaic.version = 11 : i64} {
  func.func @kernel(%arg0: i32, %arg1: memref<384x148xbf16, #tpu.memory_space<vmem>>, %arg2: memref<3x148x64xbf16, #tpu.memory_space<vmem>>, %arg3: memref<6x384xbf16, #tpu.memory_space<vmem>>, %arg4: memref<64x32xbf16, #tpu.memory_space<vmem>>, %arg5: memref<1x32xf32, #tpu.memory_space<vmem>>, %arg6: memref<32x128xbf16, #tpu.memory_space<vmem>>, %arg7: memref<1x128xf32, #tpu.memory_space<vmem>>, %arg8: memref<6x128xf32, #tpu.memory_space<vmem>>) attributes {dimension_semantics = [#tpu.dimension_semantics<arbitrary>], iteration_bounds = array<i64: 1>, scalar_prefetch = 0 : i64, scratch_operands = 0 : i64, tpu.core_type = #tpu.core_type<tc>, window_params = [{pipeline_mode = #tpu.pipeline_mode<synchronous>, transform_indices = @transform_0, window_bounds = array<i64: 384, 148>}, {pipeline_mode = #tpu.pipeline_mode<synchronous>, transform_indices = @transform_1, window_bounds = array<i64: 3, 148, 64>}, {pipeline_mode = #tpu.pipeline_mode<synchronous>, transform_indices = @transform_2, window_bounds = array<i64: 6, 384>}, {pipeline_mode = #tpu.pipeline_mode<synchronous>, transform_indices = @transform_3, window_bounds = array<i64: 64, 32>}, {pipeline_mode = #tpu.pipeline_mode<synchronous>, transform_indices = @transform_4, window_bounds = array<i64: 1, 32>}, {pipeline_mode = #tpu.pipeline_mode<synchronous>, transform_indices = @transform_5, window_bounds = array<i64: 32, 128>}, {pipeline_mode = #tpu.pipeline_mode<synchronous>, transform_indices = @transform_6, window_bounds = array<i64: 1, 128>}, {pipeline_mode = #tpu.pipeline_mode<synchronous>, transform_indices = @transform_7, window_bounds = array<i64: 6, 128>}]} {
    %c0 = arith.constant 0 : index
    %c0_0 = arith.constant 0 : index
    %0 = vector.load %arg1[%c0, %c0_0] : memref<384x148xbf16, #tpu.memory_space<vmem>>, vector<128x148xbf16>
    %c0_1 = arith.constant 0 : index
    %c0_2 = arith.constant 0 : index
    %c0_3 = arith.constant 0 : index
    %1 = vector.load %arg2[%c0_1, %c0_2, %c0_3] : memref<3x148x64xbf16, #tpu.memory_space<vmem>>, vector<1x148x64xbf16>
    %2 = vector.shape_cast %1 : vector<1x148x64xbf16> to vector<148x64xbf16>
    %cst = arith.constant dense<0.000000e+00> : vector<128x64xf32>
    %3 = tpu.matmul %0, %2, %cst {dimension_numbers = #tpu.dot_dimension_numbers<[1], [0], [0], [1], [0, 0, 1, 1], [], []>} : vector<128x148xbf16>, vector<148x64xbf16>, vector<128x64xf32> -> vector<128x64xf32>
    %cst_4 = arith.constant 0.000000e+00 : f32
    %4 = vector.broadcast %cst_4 : f32 to vector<128x64xf32>
    %5 = arith.maximumf %3, %4 : vector<128x64xf32>
    %c128 = arith.constant 128 : index
    %c0_5 = arith.constant 0 : index
    %6 = vector.load %arg1[%c128, %c0_5] : memref<384x148xbf16, #tpu.memory_space<vmem>>, vector<128x148xbf16>
    %c1 = arith.constant 1 : index
    %c0_6 = arith.constant 0 : index
    %c0_7 = arith.constant 0 : index
    %7 = vector.load %arg2[%c1, %c0_6, %c0_7] : memref<3x148x64xbf16, #tpu.memory_space<vmem>>, vector<1x148x64xbf16>
    %8 = vector.shape_cast %7 : vector<1x148x64xbf16> to vector<148x64xbf16>
    %cst_8 = arith.constant dense<0.000000e+00> : vector<128x64xf32>
    %9 = tpu.matmul %6, %8, %cst_8 {dimension_numbers = #tpu.dot_dimension_numbers<[1], [0], [0], [1], [0, 0, 1, 1], [], []>} : vector<128x148xbf16>, vector<148x64xbf16>, vector<128x64xf32> -> vector<128x64xf32>
    %cst_9 = arith.constant 0.000000e+00 : f32
    %10 = vector.broadcast %cst_9 : f32 to vector<128x64xf32>
    %11 = arith.maximumf %9, %10 : vector<128x64xf32>
    %c256 = arith.constant 256 : index
    %c0_10 = arith.constant 0 : index
    %12 = vector.load %arg1[%c256, %c0_10] : memref<384x148xbf16, #tpu.memory_space<vmem>>, vector<128x148xbf16>
    %c2 = arith.constant 2 : index
    %c0_11 = arith.constant 0 : index
    %c0_12 = arith.constant 0 : index
    %13 = vector.load %arg2[%c2, %c0_11, %c0_12] : memref<3x148x64xbf16, #tpu.memory_space<vmem>>, vector<1x148x64xbf16>
    %14 = vector.shape_cast %13 : vector<1x148x64xbf16> to vector<148x64xbf16>
    %cst_13 = arith.constant dense<0.000000e+00> : vector<128x64xf32>
    %15 = tpu.matmul %12, %14, %cst_13 {dimension_numbers = #tpu.dot_dimension_numbers<[1], [0], [0], [1], [0, 0, 1, 1], [], []>} : vector<128x148xbf16>, vector<148x64xbf16>, vector<128x64xf32> -> vector<128x64xf32>
    %cst_14 = arith.constant 0.000000e+00 : f32
    %16 = vector.broadcast %cst_14 : f32 to vector<128x64xf32>
    %17 = arith.maximumf %15, %16 : vector<128x64xf32>
    %18 = tpu.concatenate %5, %11, %17 in 0 : vector<128x64xf32>, vector<128x64xf32>, vector<128x64xf32> -> vector<384x64xf32>
    %c0_15 = arith.constant 0 : index
    %c0_16 = arith.constant 0 : index
    %19 = vector.load %arg3[%c0_15, %c0_16] : memref<6x384xbf16, #tpu.memory_space<vmem>>, vector<6x384xbf16>
    %20 = arith.truncf %18 : vector<384x64xf32> to vector<384x64xbf16>
    %cst_17 = arith.constant dense<0.000000e+00> : vector<6x64xf32>
    %21 = tpu.matmul %19, %20, %cst_17 {dimension_numbers = #tpu.dot_dimension_numbers<[1], [0], [0], [1], [0, 0, 1, 1], [], []>} : vector<6x384xbf16>, vector<384x64xbf16>, vector<6x64xf32> -> vector<6x64xf32>
    %22 = arith.truncf %21 : vector<6x64xf32> to vector<6x64xbf16>
    %c0_18 = arith.constant 0 : index
    %c0_19 = arith.constant 0 : index
    %23 = vector.load %arg4[%c0_18, %c0_19] : memref<64x32xbf16, #tpu.memory_space<vmem>>, vector<64x32xbf16>
    %cst_20 = arith.constant dense<0.000000e+00> : vector<6x32xf32>
    %24 = tpu.matmul %22, %23, %cst_20 {dimension_numbers = #tpu.dot_dimension_numbers<[1], [0], [0], [1], [0, 0, 1, 1], [], []>} : vector<6x64xbf16>, vector<64x32xbf16>, vector<6x32xf32> -> vector<6x32xf32>
    %c0_21 = arith.constant 0 : index
    %c0_22 = arith.constant 0 : index
    %25 = vector.load %arg5[%c0_21, %c0_22] : memref<1x32xf32, #tpu.memory_space<vmem>>, vector<1x32xf32>
    %26 = vector.broadcast %25 : vector<1x32xf32> to vector<6x32xf32>
    %27 = arith.addf %24, %26 : vector<6x32xf32>
    %28 = arith.truncf %27 : vector<6x32xf32> to vector<6x32xbf16>
    %c0_23 = arith.constant 0 : index
    %c0_24 = arith.constant 0 : index
    %29 = vector.load %arg6[%c0_23, %c0_24] : memref<32x128xbf16, #tpu.memory_space<vmem>>, vector<32x128xbf16>
    %cst_25 = arith.constant dense<0.000000e+00> : vector<6x128xf32>
    %30 = tpu.matmul %28, %29, %cst_25 {dimension_numbers = #tpu.dot_dimension_numbers<[1], [0], [0], [1], [0, 0, 1, 1], [], []>} : vector<6x32xbf16>, vector<32x128xbf16>, vector<6x128xf32> -> vector<6x128xf32>
    %c0_26 = arith.constant 0 : index
    %c0_27 = arith.constant 0 : index
    %31 = vector.load %arg7[%c0_26, %c0_27] : memref<1x128xf32, #tpu.memory_space<vmem>>, vector<1x128xf32>
    %32 = vector.broadcast %31 : vector<1x128xf32> to vector<6x128xf32>
    %33 = arith.addf %30, %32 : vector<6x128xf32>
    %c0_28 = arith.constant 0 : index
    %c0_29 = arith.constant 0 : index
    %34 = vector.load %arg8[%c0_28, %c0_29] : memref<6x128xf32, #tpu.memory_space<vmem>>, vector<6x128xf32>
    tpu.vector_store %arg8[%c0_28, %c0_29], %33 {strides = array<i32>} : memref<6x128xf32, #tpu.memory_space<vmem>>, vector<6x128xf32>,
    return
  }
  func.func @transform_0(%arg0: i32) -> (i32, i32) {
    %c0_i32 = arith.constant 0 : i32
    %c0_i32_0 = arith.constant 0 : i32
    %c0_i32_1 = arith.constant 0 : i32
    return %c0_i32, %c0_i32_0 : i32, i32
  }
  func.func @transform_1(%arg0: i32) -> (i32, i32, i32) {
    %c0_i32 = arith.constant 0 : i32
    %c0_i32_0 = arith.constant 0 : i32
    %c0_i32_1 = arith.constant 0 : i32
    %c0_i32_2 = arith.constant 0 : i32
    return %c0_i32, %c0_i32_0, %c0_i32_1 : i32, i32, i32
  }
  func.func @transform_2(%arg0: i32) -> (i32, i32) {
    %c0_i32 = arith.constant 0 : i32
    %c0_i32_0 = arith.constant 0 : i32
    %c0_i32_1 = arith.constant 0 : i32
    return %c0_i32, %c0_i32_0 : i32, i32
  }
  func.func @transform_3(%arg0: i32) -> (i32, i32) {
    %c0_i32 = arith.constant 0 : i32
    %c0_i32_0 = arith.constant 0 : i32
    %c0_i32_1 = arith.constant 0 : i32
    return %c0_i32, %c0_i32_0 : i32, i32
  }
  func.func @transform_4(%arg0: i32) -> (i32, i32) {
    %c0_i32 = arith.constant 0 : i32
    %c0_i32_0 = arith.constant 0 : i32
    %c0_i32_1 = arith.constant 0 : i32
    return %c0_i32, %c0_i32_0 : i32, i32
  }
  func.func @transform_5(%arg0: i32) -> (i32, i32) {
    %c0_i32 = arith.constant 0 : i32
    %c0_i32_0 = arith.constant 0 : i32
    %c0_i32_1 = arith.constant 0 : i32
    return %c0_i32, %c0_i32_0 : i32, i32
  }
  func.func @transform_6(%arg0: i32) -> (i32, i32) {
    %c0_i32 = arith.constant 0 : i32
    %c0_i32_0 = arith.constant 0 : i32
    %c0_i32_1 = arith.constant 0 : i32
    return %c0_i32, %c0_i32_0 : i32, i32
  }
  func.func @transform_7(%arg0: i32) -> (i32, i32) {
    %c0_i32 = arith.constant 0 : i32
    %c0_i32_0 = arith.constant 0 : i32
    %c0_i32_1 = arith.constant 0 : i32
    return %c0_i32, %c0_i32_0 : i32, i32
  }
}

</mosaic_0001>

<llo_original>
// kernel: _lambda_.1
$region0: #{_lambda_.1}
  #allocation0 [shape = 'u32[]', space=smem, size = 0x4, offset = 0x4, fixed_abs, tag = 'smem constant byte address 0x4 - core index']
  #allocation1 [shape = 'u32[144,128]{1,0:T(1,128)}', space=vmem, size = 0x12000, scoped, tag = 'internal scratch']
  %s0 = inlined_call_operand.vmem [shape: bf16[384,148], index: 0, kind: input, shape index: {}]
  %s1 = inlined_call_operand.vmem [shape: bf16[3,148,64], index: 1, kind: input, shape index: {}]
  %s2 = inlined_call_operand.vmem [shape: bf16[6,384], index: 2, kind: input, shape index: {}]
  %s3 = inlined_call_operand.vmem [shape: bf16[64,32], index: 3, kind: input, shape index: {}]
  %s4 = inlined_call_operand.vmem [shape: f32[1,32], index: 4, kind: input, shape index: {}]
  %s5 = inlined_call_operand.vmem [shape: bf16[32,128], index: 5, kind: input, shape index: {}]
  %s6 = inlined_call_operand.vmem [shape: f32[1,128], index: 6, kind: input, shape index: {}]
  %s7 = inlined_call_operand.vmem [shape: f32[6,128], index: 7, kind: output, shape index: {}]
  %s8 = sld [smem:[#allocation0]]
  $region38: #{_lambda_.1} parent=0
    _
  %s10 = ssub.s32 1, %s8
  %s11 = scalar_select 0, %s10, %s8
  // Predicated region
  $region2: #{_lambda_.1} parent=0 // pred_check
    _
  $region3: #{_lambda_.1} parent=0 // pred_check_branch
    %13 = sbr.rel (0) target = $region5
  $region4: #{_lambda_.1} parent=0 // pred_region
    _
  $region5: #{_lambda_.1} parent=0 // pred_fallthru
    _
  // Predicated region
  $region6: #{_lambda_.1} parent=0 // pred_check
    _
  $region7: #{_lambda_.1} parent=0 // pred_check_branch
    %15 = sbr.rel (0) target = $region9
  $region8: #{_lambda_.1} parent=0 // pred_region
    _
  $region9: #{_lambda_.1} parent=0 // pred_fallthru
    _
  // Predicated region
  $region10: #{_lambda_.1} parent=0 // pred_check
    _
  $region11: #{_lambda_.1} parent=0 // pred_check_branch
    %17 = sbr.rel (0) target = $region13
  $region12: #{_lambda_.1} parent=0 // pred_region
    _
  $region13: #{_lambda_.1} parent=0 // pred_fallthru
    _
  // Predicated region
  $region14: #{_lambda_.1} parent=0 // pred_check
    _
  $region15: #{_lambda_.1} parent=0 // pred_check_branch
    %19 = sbr.rel (0) target = $region17
  $region16: #{_lambda_.1} parent=0 // pred_region
    _
  $region17: #{_lambda_.1} parent=0 // pred_fallthru
    _
  // Predicated region
  $region18: #{_lambda_.1} parent=0 // pred_check
    _
  $region19: #{_lambda_.1} parent=0 // pred_check_branch
    %21 = sbr.rel (0) target = $region21
  $region20: #{_lambda_.1} parent=0 // pred_region
    _
  $region21: #{_lambda_.1} parent=0 // pred_fallthru
    _
  // Predicated region
  $region22: #{_lambda_.1} parent=0 // pred_check
    _
  $region23: #{_lambda_.1} parent=0 // pred_check_branch
    %23 = sbr.rel (0) target = $region25
  $region24: #{_lambda_.1} parent=0 // pred_region
    _
  $region25: #{_lambda_.1} parent=0 // pred_fallthru
    _
  // Predicated region
  $region26: #{_lambda_.1} parent=0 // pred_check
    _
  $region27: #{_lambda_.1} parent=0 // pred_check_branch
    %25 = sbr.rel (0) target = $region29
  $region28: #{_lambda_.1} parent=0 // pred_region
    _
  $region29: #{_lambda_.1} parent=0 // pred_fallthru
    _
  %v27 = vld [vmem:[%s0] sm:$0xff]
  %v28 = vld [vmem:[%s0 + $0x8] sm:$0xff]
  %v29 = vld [vmem:[%s0 + $0x10] sm:$0xff]
  %v30 = vld [vmem:[%s0 + $0x18] sm:$0xff]
  %v31 = vld [vmem:[%s0 + $0x20] sm:$0xff]
  %v32 = vld [vmem:[%s0 + $0x28] sm:$0xff]
  %v33 = vld [vmem:[%s0 + $0x30] sm:$0xff]
  %v34 = vld [vmem:[%s0 + $0x38] sm:$0xff]
  %v35 = vld [vmem:[%s0 + $0x40] sm:$0xff]
  %v36 = vld [vmem:[%s0 + $0x48] sm:$0xff]
  %v37 = vld [vmem:[%s0 + $0x50] sm:$0xff]
  %v38 = vld [vmem:[%s0 + $0x58] sm:$0xff]
  %v39 = vld [vmem:[%s0 + $0x60] sm:$0xff]
  %v40 = vld [vmem:[%s0 + $0x68] sm:$0xff]
  %v41 = vld [vmem:[%s0 + $0x70] sm:$0xff]
  %v42 = vld [vmem:[%s0 + $0x78] sm:$0xff]
  %v43 = vld [vmem:[%s1] sm:$0xf]
  %v44 = vld [vmem:[%s1 + $0x4] sm:$0xf]
  %v45 = vld [vmem:[%s1 + $0x8] sm:$0xf]
  %v46 = vld [vmem:[%s1 + $0xc] sm:$0xf]
  %v47 = vld [vmem:[%s1 + $0x10] sm:$0xf]
  %v48 = vld [vmem:[%s1 + $0x14] sm:$0xf]
  %v49 = vld [vmem:[%s1 + $0x18] sm:$0xf]
  %v50 = vld [vmem:[%s1 + $0x1c] sm:$0xf]
  %v51 = vld [vmem:[%s1 + $0x20] sm:$0xf]
  %v52 = vld [vmem:[%s1 + $0x24] sm:$0xf]
  %v53 = vld [vmem:[%s1 + $0x28] sm:$0xf]
  %v54 = vld [vmem:[%s1 + $0x2c] sm:$0xf]
  %v55 = vld [vmem:[%s1 + $0x30] sm:$0xf]
  %v56 = vld [vmem:[%s1 + $0x34] sm:$0xf]
  %v57 = vld [vmem:[%s1 + $0x38] sm:$0xf]
  %v58 = vld [vmem:[%s1 + $0x3c] sm:$0xf]
  %v59 = vld [vmem:[%s1 + $0x40] sm:$0xf]
  %v60 = vld [vmem:[%s1 + $0x44] sm:$0xf]
  %v61 = vld [vmem:[%s1 + $0x48] sm:$0x3]
  %v78 = vunpack.c.l.b16 %v27
  %v79 = vunpack.c.h.b16 %v27
  %v80 = vunpack.c.l.b16 %v28
  %v81 = vunpack.c.h.b16 %v28
  %v82 = vunpack.c.l.b16 %v29
  %v83 = vunpack.c.h.b16 %v29
  %v84 = vunpack.c.l.b16 %v30
  %v85 = vunpack.c.h.b16 %v30
  %v86 = vunpack.c.l.b16 %v31
  %v87 = vunpack.c.h.b16 %v31
  %v88 = vunpack.c.l.b16 %v32
  %v89 = vunpack.c.h.b16 %v32
  %v90 = vunpack.c.l.b16 %v33
  %v91 = vunpack.c.h.b16 %v33
  %v92 = vunpack.c.l.b16 %v34
  %v93 = vunpack.c.h.b16 %v34
  %v94 = vunpack.c.l.b16 %v35
  %v95 = vunpack.c.h.b16 %v35
  %v96 = vunpack.c.l.b16 %v36
  %v97 = vunpack.c.h.b16 %v36
  %v98 = vunpack.c.l.b16 %v37
  %v99 = vunpack.c.h.b16 %v37
  %v100 = vunpack.c.l.b16 %v38
  %v101 = vunpack.c.h.b16 %v38
  %v102 = vunpack.c.l.b16 %v39
  %v103 = vunpack.c.h.b16 %v39
  %v104 = vunpack.c.l.b16 %v40
  %v105 = vunpack.c.h.b16 %v40
  %v106 = vunpack.c.l.b16 %v41
  %v107 = vunpack.c.h.b16 %v41
  %v108 = vunpack.c.l.b16 %v42
  %v109 = vunpack.c.h.b16 %v42
  %v110 = vpack.c.b16 %v80, %v78
  %v111 = vpack.c.b16 %v81, %v79
  %v112 = vpack.c.b16 %v84, %v82
  %v113 = vpack.c.b16 %v85, %v83
  %v114 = vpack.c.b16 %v88, %v86
  %v115 = vpack.c.b16 %v89, %v87
  %v116 = vpack.c.b16 %v92, %v90
  %v117 = vpack.c.b16 %v93, %v91
  %v118 = vpack.c.b16 %v96, %v94
  %v119 = vpack.c.b16 %v97, %v95
  %v120 = vpack.c.b16 %v100, %v98
  %v121 = vpack.c.b16 %v101, %v99
  %v122 = vpack.c.b16 %v104, %v102
  %v123 = vpack.c.b16 %v105, %v103
  %v124 = vpack.c.b16 %v108, %v106
  %v125 = vpack.c.b16 %v109, %v107
  %v153 = vunpack.c.l.b16 %v43
  %v154 = vunpack.c.l.b16 %v44
  %v155 = vunpack.c.l.b16 %v45
  %v156 = vunpack.c.l.b16 %v46
  %v157 = vunpack.c.l.b16 %v47
  %v158 = vunpack.c.l.b16 %v48
  %v159 = vunpack.c.l.b16 %v49
  %v160 = vunpack.c.l.b16 %v50
  %v161 = vunpack.c.l.b16 %v51
  %v162 = vunpack.c.l.b16 %v52
  %v163 = vunpack.c.l.b16 %v53
  %v164 = vunpack.c.l.b16 %v54
  %v165 = vunpack.c.l.b16 %v55
  %v166 = vunpack.c.l.b16 %v56
  %v167 = vunpack.c.l.b16 %v57
  %v168 = vunpack.c.l.b16 %v58
  %v169 = vunpack.c.l.b16 %v59
  %v170 = vunpack.c.l.b16 %v60
  %v171 = vunpack.c.l.b16 %v61
  %v172 = vpack.c.b16 %v154, %v153
  %v173 = vpack.c.b16 %v156, %v155
  %v174 = vpack.c.b16 %v158, %v157
  %v175 = vpack.c.b16 %v160, %v159
  %v176 = vpack.c.b16 %v162, %v161
  %v177 = vpack.c.b16 %v164, %v163
  %v178 = vpack.c.b16 %v166, %v165
  %v179 = vpack.c.b16 %v168, %v167
  %v180 = vpack.c.b16 %v170, %v169
  %v181 = vpack.c.b16 %v171, %v171
  %vm191 = vcmask 162816
  %v193 = vsel %vm191, %v111, 0
  %v196 = vsel %vm191, %v113, 0
  %v199 = vsel %vm191, %v115, 0
  %v202 = vsel %vm191, %v117, 0
  %v205 = vsel %vm191, %v119, 0
  %v208 = vsel %vm191, %v121, 0
  %v211 = vsel %vm191, %v123, 0
  %v214 = vsel %vm191, %v125, 0
  %vm216 = vcmask 1041408
  %v218 = vsel %vm216, %v181, 0
  %220 = vmatprep.subr.bf16.mxu0 0
  %221 = vmatpush1.bf16.msra.mxu0 %v172
  %222 = vmatprep.subr.bf16.mxu0 0
  %223 = vmatpush1.bf16.msra.mxu0 %v173
  %224 = vmatprep.subr.bf16.mxu0 0
  %225 = vmatpush1.bf16.msra.mxu0 %v174
  %226 = vmatprep.subr.bf16.mxu0 0
  %227 = vmatpush1.bf16.msra.mxu0 %v175
  %228 = vmatprep.subr.bf16.mxu0 0
  %229 = vmatpush1.bf16.msra.mxu0 %v176
  %230 = vmatprep.subr.bf16.mxu0 0
  %231 = vmatpush1.bf16.msra.mxu0 %v177
  %232 = vmatprep.subr.bf16.mxu0 0
  %233 = vmatpush1.bf16.msra.mxu0 %v178
  %234 = vmatprep.subr.bf16.mxu0 0
  %235 = vmatpush1.bf16.msra.mxu0 %v179
  %236 = vmatprep.subr.bf16.mxu0 0
  %237 = vmatpush1.bf16.msra.mxu0 %v180
  %238 = vmatprep.subr.bf16.mxu0 0
  %239 = vmatpush1.bf16.msra.mxu0 %v218
  %240 = vmatprep.subr.bf16.mxu0 0
  %241 = vmatpush1.bf16.msra.mxu0 0
  %242 = vmatprep.subr.bf16.mxu0 0
  %243 = vmatpush1.bf16.msra.mxu0 0
  %244 = vmatprep.subr.bf16.mxu0 0
  %245 = vmatpush1.bf16.msra.mxu0 0
  %246 = vmatprep.subr.bf16.mxu0 0
  %247 = vmatpush1.bf16.msra.mxu0 0
  %248 = vmatprep.subr.bf16.mxu0 0
  %249 = vmatpush1.bf16.msra.mxu0 0
  %250 = vmatprep.subr.bf16.mxu0 0
  %251 = vmatpush1.bf16.msra.mxu0 0
  %252 = vmatprep.mubr.bf16.mxu0 %v193
  %253 = vmatmul.mubr.bf16.gmra.mrb[0].mxu0 %v110
  %v254 = vpop.f32.mrb[0].mxu0
  %v255 = vadd.f32 0.0, %v254
  %v256 = vpop.f32.mrb[0].mxu0
  %v257 = vpop.f32.mrb[0].mxu0
  %v258 = vadd.f32 0.0, %v257
  %v259 = vpop.f32.mrb[0].mxu0
  %260 = vmatprep.mubr.bf16.mxu0 %v196
  %261 = vmatmul.mubr.bf16.gmra.mrb[0].mxu0 %v112
  %v262 = vpop.f32.mrb[0].mxu0
  %v263 = vadd.f32 0.0, %v262
  %v264 = vpop.f32.mrb[0].mxu0
  %v265 = vpop.f32.mrb[0].mxu0
  %v266 = vadd.f32 0.0, %v265
  %v267 = vpop.f32.mrb[0].mxu0
  %268 = vmatprep.mubr.bf16.mxu0 %v199
  %269 = vmatmul.mubr.bf16.gmra.mrb[0].mxu0 %v114
  %v270 = vpop.f32.mrb[0].mxu0
  %v271 = vadd.f32 0.0, %v270
  %v272 = vpop.f32.mrb[0].mxu0
  %v273 = vpop.f32.mrb[0].mxu0
  %v274 = vadd.f32 0.0, %v273
  %v275 = vpop.f32.mrb[0].mxu0
  %276 = vmatprep.mubr.bf16.mxu0 %v202
  %277 = vmatmul.mubr.bf16.gmra.mrb[0].mxu0 %v116
  %v278 = vpop.f32.mrb[0].mxu0
  %v279 = vadd.f32 0.0, %v278
  %v280 = vpop.f32.mrb[0].mxu0
  %v281 = vpop.f32.mrb[0].mxu0
  %v282 = vadd.f32 0.0, %v281
  %v283 = vpop.f32.mrb[0].mxu0
  %284 = vmatprep.mubr.bf16.mxu0 %v205
  %285 = vmatmul.mubr.bf16.gmra.mrb[0].mxu0 %v118
  %v286 = vpop.f32.mrb[0].mxu0
  %v287 = vadd.f32 0.0, %v286
  %v288 = vpop.f32.mrb[0].mxu0
  %v289 = vpop.f32.mrb[0].mxu0
  %v290 = vadd.f32 0.0, %v289
  %v291 = vpop.f32.mrb[0].mxu0
  %292 = vmatprep.mubr.bf16.mxu0 %v208
  %293 = vmatmul.mubr.bf16.gmra.mrb[0].mxu0 %v120
  %v294 = vpop.f32.mrb[0].mxu0
  %v295 = vadd.f32 0.0, %v294
  %v296 = vpop.f32.mrb[0].mxu0
  %v297 = vpop.f32.mrb[0].mxu0
  %v298 = vadd.f32 0.0, %v297
  %v299 = vpop.f32.mrb[0].mxu0
  %300 = vmatprep.mubr.bf16.mxu0 %v211
  %301 = vmatmul.mubr.bf16.gmra.mrb[0].mxu0 %v122
  %v302 = vpop.f32.mrb[0].mxu0
  %v303 = vadd.f32 0.0, %v302
  %v304 = vpop.f32.mrb[0].mxu0
  %v305 = vpop.f32.mrb[0].mxu0
  %v306 = vadd.f32 0.0, %v305
  %v307 = vpop.f32.mrb[0].mxu0
  %308 = vmatprep.mubr.bf16.mxu0 %v214
  %309 = vmatmul.mubr.bf16.gmra.mrb[0].mxu0 %v124
  %v310 = vpop.f32.mrb[0].mxu0
  %v311 = vadd.f32 0.0, %v310
  %v312 = vpop.f32.mrb[0].mxu0
  %v313 = vpop.f32.mrb[0].mxu0
  %v314 = vadd.f32 0.0, %v313
  %v315 = vpop.f32.mrb[0].mxu0
  %316 = vdwg.mxu0
  %v317 = vmax.f32 %v255, 0.0
  %v318 = vmax.f32 %v258, 0.0
  %v319 = vmax.f32 %v263, 0.0
  %v320 = vmax.f32 %v266, 0.0
  %v321 = vmax.f32 %v271, 0.0
  %v322 = vmax.f32 %v274, 0.0
  %v323 = vmax.f32 %v279, 0.0
  %v324 = vmax.f32 %v282, 0.0
  %v325 = vmax.f32 %v287, 0.0
  %v326 = vmax.f32 %v290, 0.0
  %v327 = vmax.f32 %v295, 0.0
  %v328 = vmax.f32 %v298, 0.0
  %v329 = vmax.f32 %v303, 0.0
  %v330 = vmax.f32 %v306, 0.0
  %v331 = vmax.f32 %v311, 0.0
  %v332 = vmax.f32 %v314, 0.0
  %v333 = vld [vmem:[%s0 + $0x80] sm:$0xff]
  %v334 = vld [vmem:[%s0 + $0x88] sm:$0xff]
  %v335 = vld [vmem:[%s0 + $0x90] sm:$0xff]
  %v336 = vld [vmem:[%s0 + $0x98] sm:$0xff]
  %v337 = vld [vmem:[%s0 + $0xa0] sm:$0xff]
  %v338 = vld [vmem:[%s0 + $0xa8] sm:$0xff]
  %v339 = vld [vmem:[%s0 + $0xb0] sm:$0xff]
  %v340 = vld [vmem:[%s0 + $0xb8] sm:$0xff]
  %v341 = vld [vmem:[%s0 + $0xc0] sm:$0xff]
  %v342 = vld [vmem:[%s0 + $0xc8] sm:$0xff]
  %v343 = vld [vmem:[%s0 + $0xd0] sm:$0xff]
  %v344 = vld [vmem:[%s0 + $0xd8] sm:$0xff]
  %v345 = vld [vmem:[%s0 + $0xe0] sm:$0xff]
  %v346 = vld [vmem:[%s0 + $0xe8] sm:$0xff]
  %v347 = vld [vmem:[%s0 + $0xf0] sm:$0xff]
  %v348 = vld [vmem:[%s0 + $0xf8] sm:$0xff]
  %s349 = scalar_lea.vmem %s1, 76
  %v350 = vld [vmem:[%s349] sm:$0xf]
  %v351 = vld [vmem:[%s349 + $0x4] sm:$0xf]
  %v352 = vld [vmem:[%s349 + $0x8] sm:$0xf]
  %v353 = vld [vmem:[%s349 + $0xc] sm:$0xf]
  %v354 = vld [vmem:[%s349 + $0x10] sm:$0xf]
  %v355 = vld [vmem:[%s349 + $0x14] sm:$0xf]
  %v356 = vld [vmem:[%s349 + $0x18] sm:$0xf]
  %v357 = vld [vmem:[%s349 + $0x1c] sm:$0xf]
  %v358 = vld [vmem:[%s349 + $0x20] sm:$0xf]
  %v359 = vld [vmem:[%s349 + $0x24] sm:$0xf]
  %v360 = vld [vmem:[%s349 + $0x28] sm:$0xf]
  %v361 = vld [vmem:[%s349 + $0x2c] sm:$0xf]
  %v362 = vld [vmem:[%s349 + $0x30] sm:$0xf]
  %v363 = vld [vmem:[%s349 + $0x34] sm:$0xf]
  %v364 = vld [vmem:[%s349 + $0x38] sm:$0xf]
  %v365 = vld [vmem:[%s349 + $0x3c] sm:$0xf]
  %v366 = vld [vmem:[%s349 + $0x40] sm:$0xf]
  %v367 = vld [vmem:[%s349 + $0x44] sm:$0xf]
  %v368 = vld [vmem:[%s349 + $0x48] sm:$0x3]
  %v385 = vunpack.c.l.b16 %v333
  %v386 = vunpack.c.h.b16 %v333
  %v387 = vunpack.c.l.b16 %v334
  %v388 = vunpack.c.h.b16 %v334
  %v389 = vunpack.c.l.b16 %v335
  %v390 = vunpack.c.h.b16 %v335
  %v391 = vunpack.c.l.b16 %v336
  %v392 = vunpack.c.h.b16 %v336
  %v393 = vunpack.c.l.b16 %v337
  %v394 = vunpack.c.h.b16 %v337
  %v395 = vunpack.c.l.b16 %v338
  %v396 = vunpack.c.h.b16 %v338
  %v397 = vunpack.c.l.b16 %v339
  %v398 = vunpack.c.h.b16 %v339
  %v399 = vunpack.c.l.b16 %v340
  %v400 = vunpack.c.h.b16 %v340
  %v401 = vunpack.c.l.b16 %v341
  %v402 = vunpack.c.h.b16 %v341
  %v403 = vunpack.c.l.b16 %v342
  %v404 = vunpack.c.h.b16 %v342
  %v405 = vunpack.c.l.b16 %v343
  %v406 = vunpack.c.h.b16 %v343
  %v407 = vunpack.c.l.b16 %v344
  %v408 = vunpack.c.h.b16 %v344
  %v409 = vunpack.c.l.b16 %v345
  %v410 = vunpack.c.h.b16 %v345
  %v411 = vunpack.c.l.b16 %v346
  %v412 = vunpack.c.h.b16 %v346
  %v413 = vunpack.c.l.b16 %v347
  %v414 = vunpack.c.h.b16 %v347
  %v415 = vunpack.c.l.b16 %v348
  %v416 = vunpack.c.h.b16 %v348
  %v417 = vpack.c.b16 %v387, %v385
  %v418 = vpack.c.b16 %v388, %v386
  %v419 = vpack.c.b16 %v391, %v389
  %v420 = vpack.c.b16 %v392, %v390
  %v421 = vpack.c.b16 %v395, %v393
  %v422 = vpack.c.b16 %v396, %v394
  %v423 = vpack.c.b16 %v399, %v397
  %v424 = vpack.c.b16 %v400, %v398
  %v425 = vpack.c.b16 %v403, %v401
  %v426 = vpack.c.b16 %v404, %v402
  %v427 = vpack.c.b16 %v407, %v405
  %v428 = vpack.c.b16 %v408, %v406
  %v429 = vpack.c.b16 %v411, %v409
  %v430 = vpack.c.b16 %v412, %v410
  %v431 = vpack.c.b16 %v415, %v413
  %v432 = vpack.c.b16 %v416, %v414
  %v460 = vunpack.c.l.b16 %v350
  %v461 = vunpack.c.l.b16 %v351
  %v462 = vunpack.c.l.b16 %v352
  %v463 = vunpack.c.l.b16 %v353
  %v464 = vunpack.c.l.b16 %v354
  %v465 = vunpack.c.l.b16 %v355
  %v466 = vunpack.c.l.b16 %v356
  %v467 = vunpack.c.l.b16 %v357
  %v468 = vunpack.c.l.b16 %v358
  %v469 = vunpack.c.l.b16 %v359
  %v470 = vunpack.c.l.b16 %v360
  %v471 = vunpack.c.l.b16 %v361
  %v472 = vunpack.c.l.b16 %v362
  %v473 = vunpack.c.l.b16 %v363
  %v474 = vunpack.c.l.b16 %v364
  %v475 = vunpack.c.l.b16 %v365
  %v476 = vunpack.c.l.b16 %v366
  %v477 = vunpack.c.l.b16 %v367
  %v478 = vunpack.c.l.b16 %v368
  %v479 = vpack.c.b16 %v461, %v460
  %v480 = vpack.c.b16 %v463, %v462
  %v481 = vpack.c.b16 %v465, %v464
  %v482 = vpack.c.b16 %v467, %v466
  %v483 = vpack.c.b16 %v469, %v468
  %v484 = vpack.c.b16 %v471, %v470
  %v485 = vpack.c.b16 %v473, %v472
  %v486 = vpack.c.b16 %v475, %v474
  %v487 = vpack.c.b16 %v477, %v476
  %v488 = vpack.c.b16 %v478, %v478
  %v499 = vsel %vm191, %v418, 0
  %v502 = vsel %vm191, %v420, 0
  %v505 = vsel %vm191, %v422, 0
  %v508 = vsel %vm191, %v424, 0
  %v511 = vsel %vm191, %v426, 0
  %v514 = vsel %vm191, %v428, 0
  %v517 = vsel %vm191, %v430, 0
  %v520 = vsel %vm191, %v432, 0
  %v523 = vsel %vm216, %v488, 0
  %525 = vmatprep.subr.bf16.mxu0 0
  %526 = vmatpush1.bf16.msra.mxu0 %v479
  %527 = vmatprep.subr.bf16.mxu0 0
  %528 = vmatpush1.bf16.msra.mxu0 %v480
  %529 = vmatprep.subr.bf16.mxu0 0
  %530 = vmatpush1.bf16.msra.mxu0 %v481
  %531 = vmatprep.subr.bf16.mxu0 0
  %532 = vmatpush1.bf16.msra.mxu0 %v482
  %533 = vmatprep.subr.bf16.mxu0 0
  %534 = vmatpush1.bf16.msra.mxu0 %v483
  %535 = vmatprep.subr.bf16.mxu0 0
  %536 = vmatpush1.bf16.msra.mxu0 %v484
  %537 = vmatprep.subr.bf16.mxu0 0
  %538 = vmatpush1.bf16.msra.mxu0 %v485
  %539 = vmatprep.subr.bf16.mxu0 0
  %540 = vmatpush1.bf16.msra.mxu0 %v486
  %541 = vmatprep.subr.bf16.mxu0 0
  %542 = vmatpush1.bf16.msra.mxu0 %v487
  %543 = vmatprep.subr.bf16.mxu0 0
  %544 = vmatpush1.bf16.msra.mxu0 %v523
  %545 = vmatprep.subr.bf16.mxu0 0
  %546 = vmatpush1.bf16.msra.mxu0 0
  %547 = vmatprep.subr.bf16.mxu0 0
  %548 = vmatpush1.bf16.msra.mxu0 0
  %549 = vmatprep.subr.bf16.mxu0 0
  %550 = vmatpush1.bf16.msra.mxu0 0
  %551 = vmatprep.subr.bf16.mxu0 0
  %552 = vmatpush1.bf16.msra.mxu0 0
  %553 = vmatprep.subr.bf16.mxu0 0
  %554 = vmatpush1.bf16.msra.mxu0 0
  %555 = vmatprep.subr.bf16.mxu0 0
  %556 = vmatpush1.bf16.msra.mxu0 0
  %557 = vmatprep.mubr.bf16.mxu0 %v499
  %558 = vmatmul.mubr.bf16.gmra.mrb[0].mxu0 %v417
  %v559 = vpop.f32.mrb[0].mxu0
  %v560 = vadd.f32 0.0, %v559
  %v561 = vpop.f32.mrb[0].mxu0
  %v562 = vpop.f32.mrb[0].mxu0
  %v563 = vadd.f32 0.0, %v562
  %v564 = vpop.f32.mrb[0].mxu0
  %565 = vmatprep.mubr.bf16.mxu0 %v502
  %566 = vmatmul.mubr.bf16.gmra.mrb[0].mxu0 %v419
  %v567 = vpop.f32.mrb[0].mxu0
  %v568 = vadd.f32 0.0, %v567
  %v569 = vpop.f32.mrb[0].mxu0
  %v570 = vpop.f32.mrb[0].mxu0
  %v571 = vadd.f32 0.0, %v570
  %v572 = vpop.f32.mrb[0].mxu0
  %573 = vmatprep.mubr.bf16.mxu0 %v505
  %574 = vmatmul.mubr.bf16.gmra.mrb[0].mxu0 %v421
  %v575 = vpop.f32.mrb[0].mxu0
  %v576 = vadd.f32 0.0, %v575
  %v577 = vpop.f32.mrb[0].mxu0
  %v578 = vpop.f32.mrb[0].mxu0
  %v579 = vadd.f32 0.0, %v578
  %v580 = vpop.f32.mrb[0].mxu0
  %581 = vmatprep.mubr.bf16.mxu0 %v508
  %582 = vmatmul.mubr.bf16.gmra.mrb[0].mxu0 %v423
  %v583 = vpop.f32.mrb[0].mxu0
  %v584 = vadd.f32 0.0, %v583
  %v585 = vpop.f32.mrb[0].mxu0
  %v586 = vpop.f32.mrb[0].mxu0
  %v587 = vadd.f32 0.0, %v586
  %v588 = vpop.f32.mrb[0].mxu0
  %589 = vmatprep.mubr.bf16.mxu0 %v511
  %590 = vmatmul.mubr.bf16.gmra.mrb[0].mxu0 %v425
  %v591 = vpop.f32.mrb[0].mxu0
  %v592 = vadd.f32 0.0, %v591
  %v593 = vpop.f32.mrb[0].mxu0
  %v594 = vpop.f32.mrb[0].mxu0
  %v595 = vadd.f32 0.0, %v594
  %v596 = vpop.f32.mrb[0].mxu0
  %597 = vmatprep.mubr.bf16.mxu0 %v514
  %598 = vmatmul.mubr.bf16.gmra.mrb[0].mxu0 %v427
  %v599 = vpop.f32.mrb[0].mxu0
  %v600 = vadd.f32 0.0, %v599
  %v601 = vpop.f32.mrb[0].mxu0
  %v602 = vpop.f32.mrb[0].mxu0
  %v603 = vadd.f32 0.0, %v602
  %v604 = vpop.f32.mrb[0].mxu0
  %605 = vmatprep.mubr.bf16.mxu0 %v517
  %606 = vmatmul.mubr.bf16.gmra.mrb[0].mxu0 %v429
  %v607 = vpop.f32.mrb[0].mxu0
  %v608 = vadd.f32 0.0, %v607
  %v609 = vpop.f32.mrb[0].mxu0
  %v610 = vpop.f32.mrb[0].mxu0
  %v611 = vadd.f32 0.0, %v610
  %v612 = vpop.f32.mrb[0].mxu0
  %613 = vmatprep.mubr.bf16.mxu0 %v520
  %614 = vmatmul.mubr.bf16.gmra.mrb[0].mxu0 %v431
  %v615 = vpop.f32.mrb[0].mxu0
  %v616 = vadd.f32 0.0, %v615
  %v617 = vpop.f32.mrb[0].mxu0
  %v618 = vpop.f32.mrb[0].mxu0
  %v619 = vadd.f32 0.0, %v618
  %v620 = vpop.f32.mrb[0].mxu0
  %621 = vdwg.mxu0
  %v622 = vmax.f32 %v560, 0.0
  %v623 = vmax.f32 %v563, 0.0
  %v624 = vmax.f32 %v568, 0.0
  %v625 = vmax.f32 %v571, 0.0
  %v626 = vmax.f32 %v576, 0.0
  %v627 = vmax.f32 %v579, 0.0
  %v628 = vmax.f32 %v584, 0.0
  %v629 = vmax.f32 %v587, 0.0
  %v630 = vmax.f32 %v592, 0.0
  %v631 = vmax.f32 %v595, 0.0
  %v632 = vmax.f32 %v600, 0.0
  %v633 = vmax.f32 %v603, 0.0
  %v634 = vmax.f32 %v608, 0.0
  %v635 = vmax.f32 %v611, 0.0
  %v636 = vmax.f32 %v616, 0.0
  %v637 = vmax.f32 %v619, 0.0
  %v638 = vld [vmem:[%s0 + $0x100] sm:$0xff]
  %v639 = vld [vmem:[%s0 + $0x108] sm:$0xff]
  %v640 = vld [vmem:[%s0 + $0x110] sm:$0xff]
  %v641 = vld [vmem:[%s0 + $0x118] sm:$0xff]
  %v642 = vld [vmem:[%s0 + $0x120] sm:$0xff]
  %v643 = vld [vmem:[%s0 + $0x128] sm:$0xff]
  %v644 = vld [vmem:[%s0 + $0x130] sm:$0xff]
  %v645 = vld [vmem:[%s0 + $0x138] sm:$0xff]
  %v646 = vld [vmem:[%s0 + $0x140] sm:$0xff]
  %v647 = vld [vmem:[%s0 + $0x148] sm:$0xff]
  %v648 = vld [vmem:[%s0 + $0x150] sm:$0xff]
  %v649 = vld [vmem:[%s0 + $0x158] sm:$0xff]
  %v650 = vld [vmem:[%s0 + $0x160] sm:$0xff]
  %v651 = vld [vmem:[%s0 + $0x168] sm:$0xff]
  %v652 = vld [vmem:[%s0 + $0x170] sm:$0xff]
  %v653 = vld [vmem:[%s0 + $0x178] sm:$0xff]
  %s654 = scalar_lea.vmem %s1, 152
  %v655 = vld [vmem:[%s654] sm:$0xf]
  %v656 = vld [vmem:[%s654 + $0x4] sm:$0xf]
  %v657 = vld [vmem:[%s654 + $0x8] sm:$0xf]
  %v658 = vld [vmem:[%s654 + $0xc] sm:$0xf]
  %v659 = vld [vmem:[%s654 + $0x10] sm:$0xf]
  %v660 = vld [vmem:[%s654 + $0x14] sm:$0xf]
  %v661 = vld [vmem:[%s654 + $0x18] sm:$0xf]
  %v662 = vld [vmem:[%s654 + $0x1c] sm:$0xf]
  %v663 = vld [vmem:[%s654 + $0x20] sm:$0xf]
  %v664 = vld [vmem:[%s654 + $0x24] sm:$0xf]
  %v665 = vld [vmem:[%s654 + $0x28] sm:$0xf]
  %v666 = vld [vmem:[%s654 + $0x2c] sm:$0xf]
  %v667 = vld [vmem:[%s654 + $0x30] sm:$0xf]
  %v668 = vld [vmem:[%s654 + $0x34] sm:$0xf]
  %v669 = vld [vmem:[%s654 + $0x38] sm:$0xf]
  %v670 = vld [vmem:[%s654 + $0x3c] sm:$0xf]
  %v671 = vld [vmem:[%s654 + $0x40] sm:$0xf]
  %v672 = vld [vmem:[%s654 + $0x44] sm:$0xf]
  %v673 = vld [vmem:[%s654 + $0x48] sm:$0x3]
  %v690 = vunpack.c.l.b16 %v638
  %v691 = vunpack.c.h.b16 %v638
  %v692 = vunpack.c.l.b16 %v639
  %v693 = vunpack.c.h.b16 %v639
  %v694 = vunpack.c.l.b16 %v640
  %v695 = vunpack.c.h.b16 %v640
  %v696 = vunpack.c.l.b16 %v641
  %v697 = vunpack.c.h.b16 %v641
  %v698 = vunpack.c.l.b16 %v642
  %v699 = vunpack.c.h.b16 %v642
  %v700 = vunpack.c.l.b16 %v643
  %v701 = vunpack.c.h.b16 %v643
  %v702 = vunpack.c.l.b16 %v644
  %v703 = vunpack.c.h.b16 %v644
  %v704 = vunpack.c.l.b16 %v645
  %v705 = vunpack.c.h.b16 %v645
  %v706 = vunpack.c.l.b16 %v646
  %v707 = vunpack.c.h.b16 %v646
  %v708 = vunpack.c.l.b16 %v647
  %v709 = vunpack.c.h.b16 %v647
  %v710 = vunpack.c.l.b16 %v648
  %v711 = vunpack.c.h.b16 %v648
  %v712 = vunpack.c.l.b16 %v649
  %v713 = vunpack.c.h.b16 %v649
  %v714 = vunpack.c.l.b16 %v650
  %v715 = vunpack.c.h.b16 %v650
  %v716 = vunpack.c.l.b16 %v651
  %v717 = vunpack.c.h.b16 %v651
  %v718 = vunpack.c.l.b16 %v652
  %v719 = vunpack.c.h.b16 %v652
  %v720 = vunpack.c.l.b16 %v653
  %v721 = vunpack.c.h.b16 %v653
  %v722 = vpack.c.b16 %v692, %v690
  %v723 = vpack.c.b16 %v693, %v691
  %v724 = vpack.c.b16 %v696, %v694
  %v725 = vpack.c.b16 %v697, %v695
  %v726 = vpack.c.b16 %v700, %v698
  %v727 = vpack.c.b16 %v701, %v699
  %v728 = vpack.c.b16 %v704, %v702
  %v729 = vpack.c.b16 %v705, %v703
  %v730 = vpack.c.b16 %v708, %v706
  %v731 = vpack.c.b16 %v709, %v707
  %v732 = vpack.c.b16 %v712, %v710
  %v733 = vpack.c.b16 %v713, %v711
  %v734 = vpack.c.b16 %v716, %v714
  %v735 = vpack.c.b16 %v717, %v715
  %v736 = vpack.c.b16 %v720, %v718
  %v737 = vpack.c.b16 %v721, %v719
  %v765 = vunpack.c.l.b16 %v655
  %v766 = vunpack.c.l.b16 %v656
  %v767 = vunpack.c.l.b16 %v657
  %v768 = vunpack.c.l.b16 %v658
  %v769 = vunpack.c.l.b16 %v659
  %v770 = vunpack.c.l.b16 %v660
  %v771 = vunpack.c.l.b16 %v661
  %v772 = vunpack.c.l.b16 %v662
  %v773 = vunpack.c.l.b16 %v663
  %v774 = vunpack.c.l.b16 %v664
  %v775 = vunpack.c.l.b16 %v665
  %v776 = vunpack.c.l.b16 %v666
  %v777 = vunpack.c.l.b16 %v667
  %v778 = vunpack.c.l.b16 %v668
  %v779 = vunpack.c.l.b16 %v669
  %v780 = vunpack.c.l.b16 %v670
  %v781 = vunpack.c.l.b16 %v671
  %v782 = vunpack.c.l.b16 %v672
  %v783 = vunpack.c.l.b16 %v673
  %v784 = vpack.c.b16 %v766, %v765
  %v785 = vpack.c.b16 %v768, %v767
  %v786 = vpack.c.b16 %v770, %v769
  %v787 = vpack.c.b16 %v772, %v771
  %v788 = vpack.c.b16 %v774, %v773
  %v789 = vpack.c.b16 %v776, %v775
  %v790 = vpack.c.b16 %v778, %v777
  %v791 = vpack.c.b16 %v780, %v779
  %v792 = vpack.c.b16 %v782, %v781
  %v793 = vpack.c.b16 %v783, %v783
  %v804 = vsel %vm191, %v723, 0
  %v807 = vsel %vm191, %v725, 0
  %v810 = vsel %vm191, %v727, 0
  %v813 = vsel %vm191, %v729, 0
  %v816 = vsel %vm191, %v731, 0
  %v819 = vsel %vm191, %v733, 0
  %v822 = vsel %vm191, %v735, 0
  %v825 = vsel %vm191, %v737, 0
  %v828 = vsel %vm216, %v793, 0
  %830 = vmatprep.subr.bf16.mxu0 0
  %831 = vmatpush1.bf16.msra.mxu0 %v784
  %832 = vmatprep.subr.bf16.mxu0 0
  %833 = vmatpush1.bf16.msra.mxu0 %v785
  %834 = vmatprep.subr.bf16.mxu0 0
  %835 = vmatpush1.bf16.msra.mxu0 %v786
  %836 = vmatprep.subr.bf16.mxu0 0
  %837 = vmatpush1.bf16.msra.mxu0 %v787
  %838 = vmatprep.subr.bf16.mxu0 0
  %839 = vmatpush1.bf16.msra.mxu0 %v788
  %840 = vmatprep.subr.bf16.mxu0 0
  %841 = vmatpush1.bf16.msra.mxu0 %v789
  %842 = vmatprep.subr.bf16.mxu0 0
  %843 = vmatpush1.bf16.msra.mxu0 %v790
  %844 = vmatprep.subr.bf16.mxu0 0
  %845 = vmatpush1.bf16.msra.mxu0 %v791
  %846 = vmatprep.subr.bf16.mxu0 0
  %847 = vmatpush1.bf16.msra.mxu0 %v792
  %848 = vmatprep.subr.bf16.mxu0 0
  %849 = vmatpush1.bf16.msra.mxu0 %v828
  %850 = vmatprep.subr.bf16.mxu0 0
  %851 = vmatpush1.bf16.msra.mxu0 0
  %852 = vmatprep.subr.bf16.mxu0 0
  %853 = vmatpush1.bf16.msra.mxu0 0
  %854 = vmatprep.subr.bf16.mxu0 0
  %855 = vmatpush1.bf16.msra.mxu0 0
  %856 = vmatprep.subr.bf16.mxu0 0
  %857 = vmatpush1.bf16.msra.mxu0 0
  %858 = vmatprep.subr.bf16.mxu0 0
  %859 = vmatpush1.bf16.msra.mxu0 0
  %860 = vmatprep.subr.bf16.mxu0 0
  %861 = vmatpush1.bf16.msra.mxu0 0
  %862 = vmatprep.mubr.bf16.mxu0 %v804
  %863 = vmatmul.mubr.bf16.gmra.mrb[0].mxu0 %v722
  %v864 = vpop.f32.mrb[0].mxu0
  %v865 = vadd.f32 0.0, %v864
  %v866 = vpop.f32.mrb[0].mxu0
  %v867 = vpop.f32.mrb[0].mxu0
  %v868 = vadd.f32 0.0, %v867
  %v869 = vpop.f32.mrb[0].mxu0
  %870 = vmatprep.mubr.bf16.mxu0 %v807
  %871 = vmatmul.mubr.bf16.gmra.mrb[0].mxu0 %v724
  %v872 = vpop.f32.mrb[0].mxu0
  %v873 = vadd.f32 0.0, %v872
  %v874 = vpop.f32.mrb[0].mxu0
  %v875 = vpop.f32.mrb[0].mxu0
  %v876 = vadd.f32 0.0, %v875
  %v877 = vpop.f32.mrb[0].mxu0
  %878 = vmatprep.mubr.bf16.mxu0 %v810
  %879 = vmatmul.mubr.bf16.gmra.mrb[0].mxu0 %v726
  %v880 = vpop.f32.mrb[0].mxu0
  %v881 = vadd.f32 0.0, %v880
  %v882 = vpop.f32.mrb[0].mxu0
  %v883 = vpop.f32.mrb[0].mxu0
  %v884 = vadd.f32 0.0, %v883
  %v885 = vpop.f32.mrb[0].mxu0
  %886 = vmatprep.mubr.bf16.mxu0 %v813
  %887 = vmatmul.mubr.bf16.gmra.mrb[0].mxu0 %v728
  %v888 = vpop.f32.mrb[0].mxu0
  %v889 = vadd.f32 0.0, %v888
  %v890 = vpop.f32.mrb[0].mxu0
  %v891 = vpop.f32.mrb[0].mxu0
  %v892 = vadd.f32 0.0, %v891
  %v893 = vpop.f32.mrb[0].mxu0
  %894 = vmatprep.mubr.bf16.mxu0 %v816
  %895 = vmatmul.mubr.bf16.gmra.mrb[0].mxu0 %v730
  %v896 = vpop.f32.mrb[0].mxu0
  %v897 = vadd.f32 0.0, %v896
  %v898 = vpop.f32.mrb[0].mxu0
  %v899 = vpop.f32.mrb[0].mxu0
  %v900 = vadd.f32 0.0, %v899
  %v901 = vpop.f32.mrb[0].mxu0
  %902 = vmatprep.mubr.bf16.mxu0 %v819
  %903 = vmatmul.mubr.bf16.gmra.mrb[0].mxu0 %v732
  %v904 = vpop.f32.mrb[0].mxu0
  %v905 = vadd.f32 0.0, %v904
  %v906 = vpop.f32.mrb[0].mxu0
  %v907 = vpop.f32.mrb[0].mxu0
  %v908 = vadd.f32 0.0, %v907
  %v909 = vpop.f32.mrb[0].mxu0
  %910 = vmatprep.mubr.bf16.mxu0 %v822
  %911 = vmatmul.mubr.bf16.gmra.mrb[0].mxu0 %v734
  %v912 = vpop.f32.mrb[0].mxu0
  %v913 = vadd.f32 0.0, %v912
  %v914 = vpop.f32.mrb[0].mxu0
  %v915 = vpop.f32.mrb[0].mxu0
  %v916 = vadd.f32 0.0, %v915
  %v917 = vpop.f32.mrb[0].mxu0
  %918 = vmatprep.mubr.bf16.mxu0 %v825
  %919 = vmatmul.mubr.bf16.gmra.mrb[0].mxu0 %v736
  %v920 = vpop.f32.mrb[0].mxu0
  %v921 = vadd.f32 0.0, %v920
  %v922 = vpop.f32.mrb[0].mxu0
  %v923 = vpop.f32.mrb[0].mxu0
  %v924 = vadd.f32 0.0, %v923
  %v925 = vpop.f32.mrb[0].mxu0
  %926 = vdwg.mxu0
  %v927 = vmax.f32 %v865, 0.0
  %v928 = vmax.f32 %v868, 0.0
  %v929 = vmax.f32 %v873, 0.0
  %v930 = vmax.f32 %v876, 0.0
  %v931 = vmax.f32 %v881, 0.0
  %v932 = vmax.f32 %v884, 0.0
  %v933 = vmax.f32 %v889, 0.0
  %v934 = vmax.f32 %v892, 0.0
  %v935 = vmax.f32 %v897, 0.0
  %v936 = vmax.f32 %v900, 0.0
  %v937 = vmax.f32 %v905, 0.0
  %v938 = vmax.f32 %v908, 0.0
  %v939 = vmax.f32 %v913, 0.0
  %v940 = vmax.f32 %v916, 0.0
  %v941 = vmax.f32 %v921, 0.0
  %v942 = vmax.f32 %v924, 0.0
  %v943 = vld [vmem:[%s2] sm:$0x77]
  %v944 = vld [vmem:[%s2 + $0x8] sm:$0x7]
  %v945 = vpack.c.bf16 %v318, %v317
  %v946 = vpack.c.bf16 %v320, %v319
  %v947 = vpack.c.bf16 %v322, %v321
  %v948 = vpack.c.bf16 %v324, %v323
  %v949 = vpack.c.bf16 %v326, %v325
  %v950 = vpack.c.bf16 %v328, %v327
  %v951 = vpack.c.bf16 %v330, %v329
  %v952 = vpack.c.bf16 %v332, %v331
  %v953 = vpack.c.bf16 %v623, %v622
  %v954 = vpack.c.bf16 %v625, %v624
  %v955 = vpack.c.bf16 %v627, %v626
  %v956 = vpack.c.bf16 %v629, %v628
  %v957 = vpack.c.bf16 %v631, %v630
  %v958 = vpack.c.bf16 %v633, %v632
  %v959 = vpack.c.bf16 %v635, %v634
  %v960 = vpack.c.bf16 %v637, %v636
  %v961 = vpack.c.bf16 %v928, %v927
  %v962 = vpack.c.bf16 %v930, %v929
  %v963 = vpack.c.bf16 %v932, %v931
  %v964 = vpack.c.bf16 %v934, %v933
  %v965 = vpack.c.bf16 %v936, %v935
  %v966 = vpack.c.bf16 %v938, %v937
  %v967 = vpack.c.bf16 %v940, %v939
  %v968 = vpack.c.bf16 %v942, %v941
  %v971 = vunpack.c.l.b16 %v943
  %v972 = vunpack.c.h.b16 %v943
  %v973 = vunpack.c.l.b16 %v944
  %v974 = vpack.c.b16 %v971, %v971
  %v975 = vpack.c.b16 %v972, %v972
  %v976 = vpack.c.b16 %v973, %v973
  %980 = vmatprep.subr.bf16.mxu0 0
  %981 = vmatpush1.bf16.msra.mxu0 %v945
  %982 = vmatprep.subr.bf16.mxu0 0
  %983 = vmatpush1.bf16.msra.mxu0 %v946
  %984 = vmatprep.subr.bf16.mxu0 0
  %985 = vmatpush1.bf16.msra.mxu0 %v947
  %986 = vmatprep.subr.bf16.mxu0 0
  %987 = vmatpush1.bf16.msra.mxu0 %v948
  %988 = vmatprep.subr.bf16.mxu0 0
  %989 = vmatpush1.bf16.msra.mxu0 %v949
  %990 = vmatprep.subr.bf16.mxu0 0
  %991 = vmatpush1.bf16.msra.mxu0 %v950
  %992 = vmatprep.subr.bf16.mxu0 0
  %993 = vmatpush1.bf16.msra.mxu0 %v951
  %994 = vmatprep.subr.bf16.mxu0 0
  %995 = vmatpush1.bf16.msra.mxu0 %v952
  %996 = vmatprep.subr.bf16.mxu0 0
  %997 = vmatpush1.bf16.msra.mxu0 %v953
  %998 = vmatprep.subr.bf16.mxu0 0
  %999 = vmatpush1.bf16.msra.mxu0 %v954
  %1000 = vmatprep.subr.bf16.mxu0 0
  %1001 = vmatpush1.bf16.msra.mxu0 %v955
  %1002 = vmatprep.subr.bf16.mxu0 0
  %1003 = vmatpush1.bf16.msra.mxu0 %v956
  %1004 = vmatprep.subr.bf16.mxu0 0
  %1005 = vmatpush1.bf16.msra.mxu0 %v957
  %1006 = vmatprep.subr.bf16.mxu0 0
  %1007 = vmatpush1.bf16.msra.mxu0 %v958
  %1008 = vmatprep.subr.bf16.mxu0 0
  %1009 = vmatpush1.bf16.msra.mxu0 %v959
  %1010 = vmatprep.subr.bf16.mxu0 0
  %1011 = vmatpush1.bf16.msra.mxu0 %v960
  %1012 = vmatprep.mubr.bf16.mxu0 %v975
  %1013 = vmatmul.mubr.bf16.gmra.mrb[0].mxu0 %v974
  %v1014 = vpop.f32.mrb[0].mxu0
  %v1015 = vadd.f32 0.0, %v1014
  %v1016 = vpop.f32.mrb[0].mxu0
  %v1017 = vpop.f32.mrb[0].mxu0
  %v1018 = vpop.f32.mrb[0].mxu0
  %1019 = vdwg.mxu0
  %1020 = vmatprep.subr.bf16.mxu0 0
  %1021 = vmatpush1.bf16.msra.mxu0 %v961
  %1022 = vmatprep.subr.bf16.mxu0 0
  %1023 = vmatpush1.bf16.msra.mxu0 %v962
  %1024 = vmatprep.subr.bf16.mxu0 0
  %1025 = vmatpush1.bf16.msra.mxu0 %v963
  %1026 = vmatprep.subr.bf16.mxu0 0
  %1027 = vmatpush1.bf16.msra.mxu0 %v964
  %1028 = vmatprep.subr.bf16.mxu0 0
  %1029 = vmatpush1.bf16.msra.mxu0 %v965
  %1030 = vmatprep.subr.bf16.mxu0 0
  %1031 = vmatpush1.bf16.msra.mxu0 %v966
  %1032 = vmatprep.subr.bf16.mxu0 0
  %1033 = vmatpush1.bf16.msra.mxu0 %v967
  %1034 = vmatprep.subr.bf16.mxu0 0
  %1035 = vmatpush1.bf16.msra.mxu0 %v968
  %1036 = vmatprep.subr.bf16.mxu0 0
  %1037 = vmatpush1.bf16.msra.mxu0 0
  %1038 = vmatprep.subr.bf16.mxu0 0
  %1039 = vmatpush1.bf16.msra.mxu0 0
  %1040 = vmatprep.subr.bf16.mxu0 0
  %1041 = vmatpush1.bf16.msra.mxu0 0
  %1042 = vmatprep.subr.bf16.mxu0 0
  %1043 = vmatpush1.bf16.msra.mxu0 0
  %1044 = vmatprep.subr.bf16.mxu0 0
  %1045 = vmatpush1.bf16.msra.mxu0 0
  %1046 = vmatprep.subr.bf16.mxu0 0
  %1047 = vmatpush1.bf16.msra.mxu0 0
  %1048 = vmatprep.subr.bf16.mxu0 0
  %1049 = vmatpush1.bf16.msra.mxu0 0
  %1050 = vmatprep.subr.bf16.mxu0 0
  %1051 = vmatpush1.bf16.msra.mxu0 0
  %1052 = vmatprep.mubr.bf16.mxu0 0
  %1053 = vmatmul.mubr.bf16.gmra.mrb[0].mxu0 %v976
  %v1054 = vpop.f32.mrb[0].mxu0
  %v1055 = vadd.f32 %v1015, %v1054
  %v1056 = vpop.f32.mrb[0].mxu0
  %v1057 = vpop.f32.mrb[0].mxu0
  %v1058 = vpop.f32.mrb[0].mxu0
  %1059 = vdwg.mxu0
  %v1060 = vpack.c.bf16 %v1055, %v1055
  %v1061 = vld [vmem:[%s3] sm:$0xf]
  %v1062 = vld [vmem:[%s3 + $0x4] sm:$0xf]
  %v1063 = vld [vmem:[%s3 + $0x8] sm:$0xf]
  %v1064 = vld [vmem:[%s3 + $0xc] sm:$0xf]
  %v1065 = vld [vmem:[%s3 + $0x10] sm:$0xf]
  %v1066 = vld [vmem:[%s3 + $0x14] sm:$0xf]
  %v1067 = vld [vmem:[%s3 + $0x18] sm:$0xf]
  %v1068 = vld [vmem:[%s3 + $0x1c] sm:$0xf]
  %v1069 = vld [vmem:[%s4] sm:$0x1]
  %v1071 = vlaneseq
  %v1072 = vshrl.u32 %v1071, 7
  %v1073 = vsub.s32 0, %v1072
  %v1074 = vrot.slane %v1069, %v1073
  %v1084 = vunpack.c.l.b16 %v1061
  %v1085 = vunpack.c.l.b16 %v1062
  %v1086 = vunpack.c.l.b16 %v1063
  %v1087 = vunpack.c.l.b16 %v1064
  %v1088 = vunpack.c.l.b16 %v1065
  %v1089 = vunpack.c.l.b16 %v1066
  %v1090 = vunpack.c.l.b16 %v1067
  %v1091 = vunpack.c.l.b16 %v1068
  %v1092 = vpack.c.b16 %v1085, %v1084
  %v1093 = vpack.c.b16 %v1087, %v1086
  %v1094 = vpack.c.b16 %v1089, %v1088
  %v1095 = vpack.c.b16 %v1091, %v1090
  %vm1100 = vcmask 523264
  %v1102 = vsel %vm1100, %v1060, 0
  %1104 = vmatprep.subr.bf16.mxu0 0
  %1105 = vmatpush1.bf16.msra.mxu0 %v1092
  %1106 = vmatprep.subr.bf16.mxu0 0
  %1107 = vmatpush1.bf16.msra.mxu0 %v1093
  %1108 = vmatprep.subr.bf16.mxu0 0
  %1109 = vmatpush1.bf16.msra.mxu0 %v1094
  %1110 = vmatprep.subr.bf16.mxu0 0
  %1111 = vmatpush1.bf16.msra.mxu0 %v1095
  %1112 = vmatprep.subr.bf16.mxu0 0
  %1113 = vmatpush1.bf16.msra.mxu0 0
  %1114 = vmatprep.subr.bf16.mxu0 0
  %1115 = vmatpush1.bf16.msra.mxu0 0
  %1116 = vmatprep.subr.bf16.mxu0 0
  %1117 = vmatpush1.bf16.msra.mxu0 0
  %1118 = vmatprep.subr.bf16.mxu0 0
  %1119 = vmatpush1.bf16.msra.mxu0 0
  %1120 = vmatprep.subr.bf16.mxu0 0
  %1121 = vmatpush1.bf16.msra.mxu0 0
  %1122 = vmatprep.subr.bf16.mxu0 0
  %1123 = vmatpush1.bf16.msra.mxu0 0
  %1124 = vmatprep.subr.bf16.mxu0 0
  %1125 = vmatpush1.bf16.msra.mxu0 0
  %1126 = vmatprep.subr.bf16.mxu0 0
  %1127 = vmatpush1.bf16.msra.mxu0 0
  %1128 = vmatprep.subr.bf16.mxu0 0
  %1129 = vmatpush1.bf16.msra.mxu0 0
  %1130 = vmatprep.subr.bf16.mxu0 0
  %1131 = vmatpush1.bf16.msra.mxu0 0
  %1132 = vmatprep.subr.bf16.mxu0 0
  %1133 = vmatpush1.bf16.msra.mxu0 0
  %1134 = vmatprep.subr.bf16.mxu0 0
  %1135 = vmatpush1.bf16.msra.mxu0 0
  %1136 = vmatprep.mubr.bf16.mxu0 0
  %1137 = vmatmul.mubr.bf16.gmra.mrb[0].mxu0 %v1102
  %v1138 = vpop.f32.mrb[0].mxu0
  %v1139 = vadd.f32 %v1074, %v1138
  %v1140 = vpop.f32.mrb[0].mxu0
  %v1141 = vpop.f32.mrb[0].mxu0
  %v1142 = vpop.f32.mrb[0].mxu0
  %1143 = vdwg.mxu0
  %v1144 = vpack.c.bf16 %v1139, %v1139
  %v1145 = vld [vmem:[%s5] sm:$0xf]
  %v1146 = vld [vmem:[%s5 + $0x4] sm:$0xf]
  %v1147 = vld [vmem:[%s5 + $0x8] sm:$0xf]
  %v1148 = vld [vmem:[%s5 + $0xc] sm:$0xf]
  %v1149 = vld [vmem:[%s6] sm:$0x1]
  %v1151 = vlaneseq
  %v1152 = vshrl.u32 %v1151, 7
  %v1153 = vsub.s32 0, %v1152
  %v1154 = vrot.slane %v1149, %v1153
  %v1160 = vunpack.c.l.b16 %v1145
  %v1161 = vunpack.c.l.b16 %v1146
  %v1162 = vunpack.c.l.b16 %v1147
  %v1163 = vunpack.c.l.b16 %v1148
  %v1164 = vpack.c.b16 %v1161, %v1160
  %v1165 = vpack.c.b16 %v1163, %v1162
  %vm1168 = vcmask 261120
  %v1170 = vsel %vm1168, %v1144, 0
  %1172 = vmatprep.subr.bf16.mxu0 0
  %1173 = vmatpush1.bf16.msra.mxu0 %v1164
  %1174 = vmatprep.subr.bf16.mxu0 0
  %1175 = vmatpush1.bf16.msra.mxu0 %v1165
  %1176 = vmatprep.subr.bf16.mxu0 0
  %1177 = vmatpush1.bf16.msra.mxu0 0
  %1178 = vmatprep.subr.bf16.mxu0 0
  %1179 = vmatpush1.bf16.msra.mxu0 0
  %1180 = vmatprep.subr.bf16.mxu0 0
  %1181 = vmatpush1.bf16.msra.mxu0 0
  %1182 = vmatprep.subr.bf16.mxu0 0
  %1183 = vmatpush1.bf16.msra.mxu0 0
  %1184 = vmatprep.subr.bf16.mxu0 0
  %1185 = vmatpush1.bf16.msra.mxu0 0
  %1186 = vmatprep.subr.bf16.mxu0 0
  %1187 = vmatpush1.bf16.msra.mxu0 0
  %1188 = vmatprep.subr.bf16.mxu0 0
  %1189 = vmatpush1.bf16.msra.mxu0 0
  %1190 = vmatprep.subr.bf16.mxu0 0
  %1191 = vmatpush1.bf16.msra.mxu0 0
  %1192 = vmatprep.subr.bf16.mxu0 0
  %1193 = vmatpush1.bf16.msra.mxu0 0
  %1194 = vmatprep.subr.bf16.mxu0 0
  %1195 = vmatpush1.bf16.msra.mxu0 0
  %1196 = vmatprep.subr.bf16.mxu0 0
  %1197 = vmatpush1.bf16.msra.mxu0 0
  %1198 = vmatprep.subr.bf16.mxu0 0
  %1199 = vmatpush1.bf16.msra.mxu0 0
  %1200 = vmatprep.subr.bf16.mxu0 0
  %1201 = vmatpush1.bf16.msra.mxu0 0
  %1202 = vmatprep.subr.bf16.mxu0 0
  %1203 = vmatpush1.bf16.msra.mxu0 0
  %1204 = vmatprep.mubr.bf16.mxu0 0
  %1205 = vmatmul.mubr.bf16.gmra.mrb[0].mxu0 %v1170
  %v1206 = vpop.f32.mrb[0].mxu0
  %v1207 = vadd.f32 %v1154, %v1206
  %v1208 = vpop.f32.mrb[0].mxu0
  %v1209 = vpop.f32.mrb[0].mxu0
  %v1210 = vpop.f32.mrb[0].mxu0
  %1211 = vdwg.mxu0
  %1212 = vst [vmem:[%s7] sm:$0x3f] %v1207
  // Predicated region
  $region30: #{_lambda_.1} parent=0 // pred_check
    _
  $region31: #{_lambda_.1} parent=0 // pred_check_branch
    %1214 = sbr.rel (0) target = $region33
  $region32: #{_lambda_.1} parent=0 // pred_region
    _
  $region33: #{_lambda_.1} parent=0 // pred_fallthru
    _
  // Predicated region
  $region34: #{_lambda_.1} parent=0 // pred_check
    _
  $region35: #{_lambda_.1} parent=0 // pred_check_branch
    %1216 = sbr.rel (0) target = $region37
  $region36: #{_lambda_.1} parent=0 // pred_region
    _
  $region37: #{_lambda_.1} parent=0 // pred_fallthru
    _

</llo_original>
